<compile_context>
chip_gen: v5e
topology: v5e:2x2
jax: 0.10.0
libtpu: 0.0.40
codegen_flags: <defaults>
</compile_context>

<pallas_src>
import functools

import jax
import jax.numpy as jnp
from jax.experimental import pallas as pl
from jax.experimental.pallas import tpu as pltpu

_MIB = 1 << 20


def _round_up(x: int, m: int) -> int:
    return ((x + m - 1) // m) * m


def _layer_dims(input_dim: int, latent_dim: int, n_layers: int):
    """Replicates the feature-size schedule from LinearEncoder.__init__."""
    transition_step = (input_dim - latent_dim) // n_layers
    remainder = (input_dim - latent_dim) % n_layers
    start = input_dim - (transition_step + remainder)
    n_f = lambda i: start - transition_step * i
    dims = [input_dim, start]
    for i in range(n_layers - 1):
        dims.append(n_f(i + 1))
    return dims  # length n_layers + 1; dims[-1] == latent_dim


# --------------------------------------------------------------------------------------
# Hardware / feature queries (cached; conservative fallbacks if unavailable).
# --------------------------------------------------------------------------------------
@functools.lru_cache(maxsize=None)
def _hw_params():
    """Returns (vmem_capacity_bytes, mxu_dim)."""
    kind = ""
    try:
        kind = jax.devices()[0].device_kind.lower()
    except Exception:
        pass
    older = any(s in kind for s in ("v2", "v3", "v4", "v5", "v6"))
    vmem = 128 * _MIB if older else 64 * _MIB        # safe default: v7x has 64 MiB/TC
    mxu = 128 if any(s in kind for s in ("v2", "v3", "v4", "v5")) else 256
    try:
        vmem = int(pltpu.get_tpu_info().vmem_capacity_bytes)
    except Exception:
        pass
    return vmem, mxu


@functools.lru_cache(maxsize=None)
def _single_buffer_supported() -> bool:
    """Narrow feature probe: can constant blocks use pipeline_mode=pl.Buffered(1)?

    Probes on a tiny dedicated kernel so the real encoder kernel is never wrapped in a
    broad except (which previously masked errors and silently doubled param VMEM).
    """
    if not hasattr(pl, "Buffered"):
        return False

    def _k(x_ref, c_ref, o_ref):
        o_ref[...] = x_ref[...] + c_ref[...]

    try:
        f = pl.pallas_call(
            _k,
            out_shape=jax.ShapeDtypeStruct((16, 128), jnp.float32),
            grid=(2,),
            in_specs=[
                pl.BlockSpec((8, 128), lambda i: (i, 0)),
                pl.BlockSpec((8, 128), lambda i: (0, 0),
                             pipeline_mode=pl.Buffered(1)),
            ],
            out_specs=pl.BlockSpec((8, 128), lambda i: (i, 0)),
        )
        res = jax.block_until_ready(
            f(jnp.zeros((16, 128), jnp.float32), jnp.ones((8, 128), jnp.float32)))
        return bool(jnp.all(res == 1.0))
    except Exception:  # probe-only scope: failure simply means "feature unavailable"
        return False


# --------------------------------------------------------------------------------------
# Kernels
# --------------------------------------------------------------------------------------
def _fused_mlp_kernel(n_layers, compute_dtype, x_ref, *refs):
    """Whole MLP on one batch tile; params are resident VMEM blocks."""
    out_ref = refs[-1]
    params = refs[:-1]
    h = x_ref[...].astype(compute_dtype)
    for l in range(n_layers):
        w = params[2 * l][...]
        b = params[2 * l + 1][...].astype(jnp.float32)
        # MXU matmul with f32 accumulation; bias + ReLU on the VPU in f32.
        h = jnp.dot(h, w, preferred_element_type=jnp.float32) + b
        if l != n_layers - 1:
            h = jnp.maximum(h, 0.0).astype(compute_dtype)
    out_ref[...] = h.astype(out_ref.dtype)


def _linear_kernel(apply_relu, x_ref, w_ref, b_ref, o_ref, acc_ref):
    """One Linear(+ReLU) layer, K-tiled with an f32 VMEM accumulator."""
    @pl.when(pl.program_id(2) == 0)
    def _():
        acc_ref[...] = jnp.zeros_like(acc_ref)

    acc_ref[...] += jnp.dot(x_ref[...], w_ref[...], preferred_element_type=jnp.float32)

    @pl.when(pl.program_id(2) == pl.num_programs(2) - 1)
    def _():
        h = acc_ref[...] + b_ref[...].astype(jnp.float32)
        if apply_relu:
            h = jnp.maximum(h, 0.0)
        o_ref[...] = h.astype(o_ref.dtype)


def _tile_for(dim: int) -> int:
    """Largest of {512, 256, 128} that divides a 128-padded dim."""
    for t in (512, 256, 128):
        if dim % t == 0:
            return t
    return dim


def _linear_layer(x_p, w_p, b_p, *, apply_relu, out_dtype, vmem_budget, pack):
    """Standard tiled matmul pallas_call for one layer (params streamed, not resident)."""
    Bp, K = x_p.shape
    _, N = w_p.shape
    tk = _tile_for(K)
    tn = _tile_for(N)
    tm = min(512, Bp)
    tm = max(pack, (tm // pack) * pack)
    Bp2 = _round_up(Bp, tm)
    if Bp2 != Bp:
        x_p = jnp.pad(x_p, ((0, Bp2 - Bp), (0, 0)))
    grid = (Bp2 // tm, N // tn, K // tk)

    in_item = x_p.dtype.itemsize
    w_item = w_p.dtype.itemsize
    out_item = jnp.dtype(out_dtype).itemsize
    footprint = (2 * (tm * tk * in_item + tk * tn * w_item + tn * 4)
                 + 2 * tm * tn * out_item + tm * tn * 4 + 4 * _MIB)
    vmem_limit = int(min(max(footprint, 16 * _MIB), vmem_budget))

    flops = 2 * Bp2 * K * N
    bytes_accessed = int(x_p.size * in_item + w_p.size * w_item
                         + b_p.size * b_p.dtype.itemsize + Bp2 * N * out_item)

    out = pl.pallas_call(
        functools.partial(_linear_kernel, apply_relu),
        out_shape=jax.ShapeDtypeStruct((Bp2, N), out_dtype),
        grid_spec=pltpu.PrefetchScalarGridSpec(
            num_scalar_prefetch=0,
            grid=grid,
            in_specs=[
                pl.BlockSpec((tm, tk), lambda i, j, k: (i, k)),
                pl.BlockSpec((tk, tn), lambda i, j, k: (k, j)),
                pl.BlockSpec((1, tn), lambda i, j, k: (0, j)),
            ],
            out_specs=pl.BlockSpec((tm, tn), lambda i, j, k: (i, j)),
            scratch_shapes=[pltpu.VMEM((tm, tn), jnp.float32)],
        ),
        compiler_params=pltpu.CompilerParams(
            dimension_semantics=("parallel", "parallel", "arbitrary"),
            vmem_limit_bytes=vmem_limit,
        ),
        cost_estimate=pl.CostEstimate(flops=flops, transcendentals=0,
                                      bytes_accessed=bytes_accessed),
    )(x_p, w_p, b_p)
    return out[:Bp]


# --------------------------------------------------------------------------------------
# Wrapper
# --------------------------------------------------------------------------------------
def linear_encoder_forward(x, weights, biases, *, batch_tile=None,
                           compute_in_bf16=False, force_layerwise=False):
    """x: (B, input_dim). weights[l]: (in_l, out_l) (pre-transposed). biases[l]: (1, out_l)."""
    n_layers = len(weights)
    B, in_dim = x.shape
    latent_dim = weights[-1].shape[1]
    orig_dtype = x.dtype

    vmem_cap, mxu = _hw_params()
    headroom = 12 * _MIB if vmem_cap <= 64 * _MIB else 16 * _MIB  # ~52 MiB v7x / ~112 MiB v5e,v6e
    vmem_budget = max(16 * _MIB, vmem_cap - headroom)

    # ---- dtype normalization (avoid mixed-dtype promotion in the kernel); optional bf16 MXU path.
    if compute_in_bf16:
        param_dtype = jnp.bfloat16
        x = x.astype(jnp.bfloat16)
    else:
        param_dtype = orig_dtype
    weights = [w.astype(param_dtype) for w in weights]
    biases = [b.astype(jnp.float32) for b in biases]        # biases kept in f32 (tiny)
    io_dtype = x.dtype
    out_dtype = orig_dtype
    compute_dtype = (jnp.bfloat16 if jnp.dtype(param_dtype) == jnp.bfloat16
                     else jnp.float32)
    pack = 16 if jnp.dtype(io_dtype) == jnp.bfloat16 else 8  # bf16 vreg is [16,128]

    # ---- feature-dim padding: 128 lanes, or 256 for >128 dims on 256x256-MXU chips.
    def _pad_dim(d):
        if d <= 128 or mxu <= 128:
            return _round_up(d, 128)
        return _round_up(d, 256)

    dims = [w.shape[0] for w in weights] + [latent_dim]
    dims_p = [_pad_dim(d) for d in dims]
    w_p, b_p = [], []
    for l, (w, b) in enumerate(zip(weights, biases)):
        w_p.append(jnp.pad(w, ((0, dims_p[l] - w.shape[0]),
                               (0, dims_p[l + 1] - w.shape[1]))))
        b2 = b.reshape(1, -1)
        b_p.append(jnp.pad(b2, ((0, 0), (0, dims_p[l + 1] - b2.shape[1]))))

    single_buffer = _single_buffer_supported()
    param_buf = 1 if single_buffer else 2
    param_bytes = sum(int(a.size) * a.dtype.itemsize for a in (w_p + b_p))
    param_vmem = param_buf * param_bytes

    in_item = jnp.dtype(io_dtype).itemsize
    out_item = jnp.dtype(out_dtype).itemsize
    # double-buffered x/out blocks + ~3 live f32 copies of the widest intermediate, per row.
    per_row_bytes = (2 * dims_p[0] * in_item + 2 * dims_p[-1] * out_item
                     + 3 * max(dims_p) * 4)
    slack = 4 * _MIB  # Mosaic internal scratch

    resident_ok = (not force_layerwise) and (
        param_vmem <= int(0.65 * vmem_budget)
        and param_vmem + pack * per_row_bytes + slack <= vmem_budget)

    # ------------------------------------------------------------------------------
    # Layer-wise K/N-tiled path: params streamed per layer (needed first on v7x 64 MiB).
    # ------------------------------------------------------------------------------
    if not resident_ok:
        B_pad0 = _round_up(B, pack)
        h = jnp.pad(x, ((0, B_pad0 - B), (0, dims_p[0] - in_dim)))
        for l in range(n_layers):
            h = _linear_layer(
                h, w_p[l], b_p[l],
                apply_relu=(l != n_layers - 1),
                out_dtype=(out_dtype if l == n_layers - 1 else io_dtype),
                vmem_budget=vmem_budget, pack=pack)
        return h[:B, :latent_dim]

    # ------------------------------------------------------------------------------
    # Fused resident-params path.
    # ------------------------------------------------------------------------------
    if batch_tile is None:
        if B < 128:
            batch_tile = _round_up(B, pack)                 # single grid step
        else:
            avail = vmem_budget - param_vmem - slack
            tile_by_vmem = max(pack, (avail // per_row_bytes) // pack * pack)
            min_tile = min(_round_up(B, pack), 256 if mxu >= 256 else 128)
            batch_tile = min(int(tile_by_vmem), 1024, _round_up(B, pack))
            batch_tile = max(batch_tile, min_tile)
            steps = -(-B // batch_tile)
            if steps > 1 and steps % 2 == 1:
                # v7x has 2 TensorCores; an even step count avoids tail imbalance under
                # the 'parallel' batch axis (harmless on single-TC chips).
                cand = _round_up(-(-B // (steps + 1)), pack)
                if cand >= min_tile:
                    batch_tile = cand
    else:
        batch_tile = max(pack, _round_up(batch_tile, pack))

    B_pad = _round_up(B, batch_tile)
    x_p = jnp.pad(x, ((0, B_pad - B), (0, dims_p[0] - in_dim)))
    grid = (B_pad // batch_tile,)

    vmem_limit = int(min(max(param_vmem + batch_tile * per_row_bytes + slack, 16 * _MIB),
                         vmem_budget))
    flops = 2 * B_pad * sum(dims_p[l] * dims_p[l + 1] for l in range(n_layers))
    bytes_accessed = int(x_p.size * in_item + param_bytes + B_pad * dims_p[-1] * out_item)

    def _const_spec(shape):
        # constant index_map -> fetched once; single-buffer it when supported.
        if single_buffer:
            return pl.BlockSpec(shape, lambda i: (0, 0), pipeline_mode=pl.Buffered(1))
        return pl.BlockSpec(shape, lambda i: (0, 0))

    in_specs = [pl.BlockSpec((batch_tile, dims_p[0]), lambda i: (i, 0))]
    flat_params = []
    for w, b in zip(w_p, b_p):
        in_specs.append(_const_spec(w.shape))
        in_specs.append(_const_spec(b.shape))
        flat_params.extend([w, b])
    out_spec = pl.BlockSpec((batch_tile, dims_p[-1]), lambda i: (i, 0))

    kernel = functools.partial(_fused_mlp_kernel, n_layers, compute_dtype)
    out_p = pl.pallas_call(
        kernel,
        out_shape=jax.ShapeDtypeStruct((B_pad, dims_p[-1]), out_dtype),
        grid_spec=pltpu.PrefetchScalarGridSpec(
            num_scalar_prefetch=0,
            grid=grid,
            in_specs=in_specs,
            out_specs=out_spec,
        ),
        compiler_params=pltpu.CompilerParams(
            dimension_semantics=("parallel",),
            vmem_limit_bytes=vmem_limit,
        ),
        cost_estimate=pl.CostEstimate(flops=flops, transcendentals=0,
                                      bytes_accessed=bytes_accessed),
    )(x_p, *flat_params)

    return out_p[:B, :latent_dim]


# --------------------------------------------------------------------------------------
# Reference + init helpers
# --------------------------------------------------------------------------------------
def init_params(key, input_dim, latent_dim, n_layers, dtype=jnp.float32):
    dims = _layer_dims(input_dim, latent_dim, n_layers)
    weights, biases = [], []
    for l in range(n_layers):
        key, kw, kb = jax.random.split(key, 3)
        fan_in, fan_out = dims[l], dims[l + 1]
        bound = 1.0 / jnp.sqrt(fan_in)  # PyTorch nn.Linear default init range
        # stored as (in, out) == transpose of PyTorch's (out, in)
        w = jax.random.uniform(kw, (fan_in, fan_out), dtype, -bound, bound)
        b = jax.random.uniform(kb, (1, fan_out), dtype, -bound, bound)
        weights.append(w)
        biases.append(b)
    return weights, biases


def reference_forward(x, weights, biases):
    h = x
    n = len(weights)
    for l, (w, b) in enumerate(zip(weights, biases)):
        h = h @ w + b
        if l != n - 1:
            h = jnp.maximum(h, 0.0)
    return h


# TODO(synk): only 'ReLU' from the ACTIVATIONS table is implemented (the module default);
#             other activations would need the corresponding VPU op in the kernels.

if __name__ == "__main__":
    input_dim, latent_dim, n_layers = 64, 32, 4

    key = jax.random.PRNGKey(0)
    key, kp = jax.random.split(key)
    weights, biases = init_params(kp, input_dim, latent_dim, n_layers)

    # small batch (single grid step, fused resident path)
    key, kx = jax.random.split(key)
    x = jax.random.normal(kx, (8, input_dim), jnp.float32)
    out = jax.block_until_ready(linear_encoder_forward(x, weights, biases))
    ref = reference_forward(x, weights, biases)
    assert out.shape == (8, latent_dim), out.shape
    assert jnp.allclose(out, ref, atol=1e-5, rtol=1e-5), float(jnp.max(jnp.abs(out - ref)))

    # larger batch (exercises batch padding + output slicing)
    key, kx2 = jax.random.split(key)
    x2 = jax.random.normal(kx2, (40, input_dim), jnp.float32)
    out2 = jax.block_until_ready(linear_encoder_forward(x2, weights, biases))
    ref2 = reference_forward(x2, weights, biases)
    assert out2.shape == (40, latent_dim), out2.shape
    assert jnp.allclose(out2, ref2, atol=1e-5, rtol=1e-5), float(jnp.max(jnp.abs(out2 - ref2)))

    # layer-wise K/N-tiled path (streamed params) -- exercised here at small shapes.
    out3 = jax.block_until_ready(
        linear_encoder_forward(x2, weights, biases, force_layerwise=True))
    assert out3.shape == (40, latent_dim), out3.shape
    assert jnp.allclose(out3, ref2, atol=1e-5, rtol=1e-5), float(jnp.max(jnp.abs(out3 - ref2)))

    # optional bf16 MXU-input path (f32 accumulation); loose tolerance vs f32 reference.
    out4 = jax.block_until_ready(
        linear_encoder_forward(x2, weights, biases, compute_in_bf16=True))
    assert out4.shape == (40, latent_dim), out4.shape
    assert bool(jnp.all(jnp.isfinite(out4)))
    assert jnp.allclose(out4.astype(jnp.float32), ref2, atol=1e-1, rtol=1e-1)

    print("KERNEL_OK")
</pallas_src>

<mosaic_0001>
module attributes {stable_mosaic.version = 11 : i64} {
  func.func @_k(%arg0: i32, %arg1: memref<8x128xf32, #tpu.memory_space<vmem>>, %arg2: memref<8x128xf32, #tpu.memory_space<vmem>>, %arg3: memref<8x128xf32, #tpu.memory_space<vmem>>) attributes {dimension_semantics = [#tpu.dimension_semantics<arbitrary>], iteration_bounds = array<i64: 2>, scalar_prefetch = 0 : i64, scratch_operands = 0 : i64, tpu.core_type = #tpu.core_type<tc>, window_params = [{transform_indices = @transform_0, window_bounds = array<i64: 8, 128>}, {pipeline_mode = #tpu.pipeline_mode<synchronous>, transform_indices = @transform_1, window_bounds = array<i64: 8, 128>}, {transform_indices = @transform_2, window_bounds = array<i64: 8, 128>}]} {
    %c0 = arith.constant 0 : index
    %c0_0 = arith.constant 0 : index
    %0 = vector.load %arg1[%c0, %c0_0] : memref<8x128xf32, #tpu.memory_space<vmem>>, vector<8x128xf32>
    %c0_1 = arith.constant 0 : index
    %c0_2 = arith.constant 0 : index
    %1 = vector.load %arg2[%c0_1, %c0_2] : memref<8x128xf32, #tpu.memory_space<vmem>>, vector<8x128xf32>
    %2 = arith.addf %0, %1 : vector<8x128xf32>
    %c0_3 = arith.constant 0 : index
    %c0_4 = arith.constant 0 : index
    %3 = vector.load %arg3[%c0_3, %c0_4] : memref<8x128xf32, #tpu.memory_space<vmem>>, vector<8x128xf32>
    tpu.vector_store %arg3[%c0_3, %c0_4], %2 {strides = array<i32>} : memref<8x128xf32, #tpu.memory_space<vmem>>, vector<8x128xf32>,
    return
  }
  func.func @transform_0(%arg0: i32) -> (i32, i32) {
    %c0_i32 = arith.constant 0 : i32
    %c0_i32_0 = arith.constant 0 : i32
    return %arg0, %c0_i32 : i32, i32
  }
  func.func @transform_1(%arg0: i32) -> (i32, i32) {
    %c0_i32 = arith.constant 0 : i32
    %c0_i32_0 = arith.constant 0 : i32
    %c0_i32_1 = arith.constant 0 : i32
    return %c0_i32, %c0_i32_0 : i32, i32
  }
  func.func @transform_2(%arg0: i32) -> (i32, i32) {
    %c0_i32 = arith.constant 0 : i32
    %c0_i32_0 = arith.constant 0 : i32
    return %arg0, %c0_i32 : i32, i32
  }
}

module attributes {stable_mosaic.version = 11 : i64} {
  func.func @_fused_mlp_kernel(%arg0: i32, %arg1: memref<8x128xf32, #tpu.memory_space<vmem>>, %arg2: memref<128x128xf32, #tpu.memory_space<vmem>>, %arg3: memref<1x128xf32, #tpu.memory_space<vmem>>, %arg4: memref<128x128xf32, #tpu.memory_space<vmem>>, %arg5: memref<1x128xf32, #tpu.memory_space<vmem>>, %arg6: memref<128x128xf32, #tpu.memory_space<vmem>>, %arg7: memref<1x128xf32, #tpu.memory_space<vmem>>, %arg8: memref<128x128xf32, #tpu.memory_space<vmem>>, %arg9: memref<1x128xf32, #tpu.memory_space<vmem>>, %arg10: memref<8x128xf32, #tpu.memory_space<vmem>>) attributes {dimension_semantics = [#tpu.dimension_semantics<parallel>], iteration_bounds = array<i64: 1>, scalar_prefetch = 0 : i64, scratch_operands = 0 : i64, tpu.core_type = #tpu.core_type<tc>, window_params = [{transform_indices = @transform_0, window_bounds = array<i64: 8, 128>}, {pipeline_mode = #tpu.pipeline_mode<synchronous>, transform_indices = @transform_1, window_bounds = array<i64: 128, 128>}, {pipeline_mode = #tpu.pipeline_mode<synchronous>, transform_indices = @transform_2, window_bounds = array<i64: 1, 128>}, {pipeline_mode = #tpu.pipeline_mode<synchronous>, transform_indices = @transform_3, window_bounds = array<i64: 128, 128>}, {pipeline_mode = #tpu.pipeline_mode<synchronous>, transform_indices = @transform_4, window_bounds = array<i64: 1, 128>}, {pipeline_mode = #tpu.pipeline_mode<synchronous>, transform_indices = @transform_5, window_bounds = array<i64: 128, 128>}, {pipeline_mode = #tpu.pipeline_mode<synchronous>, transform_indices = @transform_6, window_bounds = array<i64: 1, 128>}, {pipeline_mode = #tpu.pipeline_mode<synchronous>, transform_indices = @transform_7, window_bounds = array<i64: 128, 128>}, {pipeline_mode = #tpu.pipeline_mode<synchronous>, transform_indices = @transform_8, window_bounds = array<i64: 1, 128>}, {transform_indices = @transform_9, window_bounds = array<i64: 8, 128>}]} {
    %c0 = arith.constant 0 : index
    %c0_0 = arith.constant 0 : index
    %0 = vector.load %arg1[%c0, %c0_0] : memref<8x128xf32, #tpu.memory_space<vmem>>, vector<8x128xf32>
    %c0_1 = arith.constant 0 : index
    %c0_2 = arith.constant 0 : index
    %1 = vector.load %arg2[%c0_1, %c0_2] : memref<128x128xf32, #tpu.memory_space<vmem>>, vector<128x128xf32>
    %c0_3 = arith.constant 0 : index
    %c0_4 = arith.constant 0 : index
    %2 = vector.load %arg3[%c0_3, %c0_4] : memref<1x128xf32, #tpu.memory_space<vmem>>, vector<1x128xf32>
    %cst = arith.constant dense<0.000000e+00> : vector<8x128xf32>
    %3 = tpu.matmul %0, %1, %cst {dimension_numbers = #tpu.dot_dimension_numbers<[1], [0], [0], [1], [0, 0, 1, 1], [], []>} : vector<8x128xf32>, vector<128x128xf32>, vector<8x128xf32> -> vector<8x128xf32>
    %4 = vector.broadcast %2 : vector<1x128xf32> to vector<8x128xf32>
    %5 = arith.addf %3, %4 : vector<8x128xf32>
    %cst_5 = arith.constant 0.000000e+00 : f32
    %6 = vector.broadcast %cst_5 : f32 to vector<8x128xf32>
    %7 = arith.maximumf %5, %6 : vector<8x128xf32>
    %c0_6 = arith.constant 0 : index
    %c0_7 = arith.constant 0 : index
    %8 = vector.load %arg4[%c0_6, %c0_7] : memref<128x128xf32, #tpu.memory_space<vmem>>, vector<128x128xf32>
    %c0_8 = arith.constant 0 : index
    %c0_9 = arith.constant 0 : index
    %9 = vector.load %arg5[%c0_8, %c0_9] : memref<1x128xf32, #tpu.memory_space<vmem>>, vector<1x128xf32>
    %cst_10 = arith.constant dense<0.000000e+00> : vector<8x128xf32>
    %10 = tpu.matmul %7, %8, %cst_10 {dimension_numbers = #tpu.dot_dimension_numbers<[1], [0], [0], [1], [0, 0, 1, 1], [], []>} : vector<8x128xf32>, vector<128x128xf32>, vector<8x128xf32> -> vector<8x128xf32>
    %11 = vector.broadcast %9 : vector<1x128xf32> to vector<8x128xf32>
    %12 = arith.addf %10, %11 : vector<8x128xf32>
    %cst_11 = arith.constant 0.000000e+00 : f32
    %13 = vector.broadcast %cst_11 : f32 to vector<8x128xf32>
    %14 = arith.maximumf %12, %13 : vector<8x128xf32>
    %c0_12 = arith.constant 0 : index
    %c0_13 = arith.constant 0 : index
    %15 = vector.load %arg6[%c0_12, %c0_13] : memref<128x128xf32, #tpu.memory_space<vmem>>, vector<128x128xf32>
    %c0_14 = arith.constant 0 : index
    %c0_15 = arith.constant 0 : index
    %16 = vector.load %arg7[%c0_14, %c0_15] : memref<1x128xf32, #tpu.memory_space<vmem>>, vector<1x128xf32>
    %cst_16 = arith.constant dense<0.000000e+00> : vector<8x128xf32>
    %17 = tpu.matmul %14, %15, %cst_16 {dimension_numbers = #tpu.dot_dimension_numbers<[1], [0], [0], [1], [0, 0, 1, 1], [], []>} : vector<8x128xf32>, vector<128x128xf32>, vector<8x128xf32> -> vector<8x128xf32>
    %18 = vector.broadcast %16 : vector<1x128xf32> to vector<8x128xf32>
    %19 = arith.addf %17, %18 : vector<8x128xf32>
    %cst_17 = arith.constant 0.000000e+00 : f32
    %20 = vector.broadcast %cst_17 : f32 to vector<8x128xf32>
    %21 = arith.maximumf %19, %20 : vector<8x128xf32>
    %c0_18 = arith.constant 0 : index
    %c0_19 = arith.constant 0 : index
    %22 = vector.load %arg8[%c0_18, %c0_19] : memref<128x128xf32, #tpu.memory_space<vmem>>, vector<128x128xf32>
    %c0_20 = arith.constant 0 : index
    %c0_21 = arith.constant 0 : index
    %23 = vector.load %arg9[%c0_20, %c0_21] : memref<1x128xf32, #tpu.memory_space<vmem>>, vector<1x128xf32>
    %cst_22 = arith.constant dense<0.000000e+00> : vector<8x128xf32>
    %24 = tpu.matmul %21, %22, %cst_22 {dimension_numbers = #tpu.dot_dimension_numbers<[1], [0], [0], [1], [0, 0, 1, 1], [], []>} : vector<8x128xf32>, vector<128x128xf32>, vector<8x128xf32> -> vector<8x128xf32>
    %25 = vector.broadcast %23 : vector<1x128xf32> to vector<8x128xf32>
    %26 = arith.addf %24, %25 : vector<8x128xf32>
    %c0_23 = arith.constant 0 : index
    %c0_24 = arith.constant 0 : index
    %27 = vector.load %arg10[%c0_23, %c0_24] : memref<8x128xf32, #tpu.memory_space<vmem>>, vector<8x128xf32>
    tpu.vector_store %arg10[%c0_23, %c0_24], %26 {strides = array<i32>} : memref<8x128xf32, #tpu.memory_space<vmem>>, vector<8x128xf32>,
    return
  }
  func.func @transform_0(%arg0: i32) -> (i32, i32) {
    %c0_i32 = arith.constant 0 : i32
    %c0_i32_0 = arith.constant 0 : i32
    return %arg0, %c0_i32 : i32, i32
  }
  func.func @transform_1(%arg0: i32) -> (i32, i32) {
    %c0_i32 = arith.constant 0 : i32
    %c0_i32_0 = arith.constant 0 : i32
    %c0_i32_1 = arith.constant 0 : i32
    return %c0_i32, %c0_i32_0 : i32, i32
  }
  func.func @transform_2(%arg0: i32) -> (i32, i32) {
    %c0_i32 = arith.constant 0 : i32
    %c0_i32_0 = arith.constant 0 : i32
    %c0_i32_1 = arith.constant 0 : i32
    return %c0_i32, %c0_i32_0 : i32, i32
  }
  func.func @transform_3(%arg0: i32) -> (i32, i32) {
    %c0_i32 = arith.constant 0 : i32
    %c0_i32_0 = arith.constant 0 : i32
    %c0_i32_1 = arith.constant 0 : i32
    return %c0_i32, %c0_i32_0 : i32, i32
  }
  func.func @transform_4(%arg0: i32) -> (i32, i32) {
    %c0_i32 = arith.constant 0 : i32
    %c0_i32_0 = arith.constant 0 : i32
    %c0_i32_1 = arith.constant 0 : i32
    return %c0_i32, %c0_i32_0 : i32, i32
  }
  func.func @transform_5(%arg0: i32) -> (i32, i32) {
    %c0_i32 = arith.constant 0 : i32
    %c0_i32_0 = arith.constant 0 : i32
    %c0_i32_1 = arith.constant 0 : i32
    return %c0_i32, %c0_i32_0 : i32, i32
  }
  func.func @transform_6(%arg0: i32) -> (i32, i32) {
    %c0_i32 = arith.constant 0 : i32
    %c0_i32_0 = arith.constant 0 : i32
    %c0_i32_1 = arith.constant 0 : i32
    return %c0_i32, %c0_i32_0 : i32, i32
  }
  func.func @transform_7(%arg0: i32) -> (i32, i32) {
    %c0_i32 = arith.constant 0 : i32
    %c0_i32_0 = arith.constant 0 : i32
    %c0_i32_1 = arith.constant 0 : i32
    return %c0_i32, %c0_i32_0 : i32, i32
  }
  func.func @transform_8(%arg0: i32) -> (i32, i32) {
    %c0_i32 = arith.constant 0 : i32
    %c0_i32_0 = arith.constant 0 : i32
    %c0_i32_1 = arith.constant 0 : i32
    return %c0_i32, %c0_i32_0 : i32, i32
  }
  func.func @transform_9(%arg0: i32) -> (i32, i32) {
    %c0_i32 = arith.constant 0 : i32
    %c0_i32_0 = arith.constant 0 : i32
    return %arg0, %c0_i32 : i32, i32
  }
}

</mosaic_0001>

<llo_original>
// kernel: tpu_custom_call.1
$region0: #{tpu_custom_call.1}
  #allocation0 [shape = 'u32[]', space=smem, size = 0x4, offset = 0x4, fixed_abs, tag = 'smem constant byte address 0x4 - core index']
  #allocation1 [shape = 'u32[72,128]{1,0:T(1,128)}', space=vmem, size = 0x9000, scoped, tag = 'internal scratch']
  %s0 = inlined_call_operand.hbm [shape: f32[16,128], index: 0, kind: input, shape index: {}]
  %s1 = inlined_call_operand.hbm [shape: f32[8,128], index: 1, kind: input, shape index: {}]
  %s2 = inlined_call_operand.hbm [shape: f32[16,128], index: 2, kind: output, shape index: {}]
  %s3 = sld [smem:[#allocation0]]
  $region49: #{tpu_custom_call.1} parent=0
    _
  %s5 = ssub.s32 1, %s3
  %s6 = scalar_select 0, %s5, %s3
  $region1: #{tpu_custom_call.1} parent=0
    #allocation2 [shape = 'u8[8192]{0}', space=vmem, size = 0x2000, scoped, tag = 'input window, operand 0']
    #allocation3 [shape = 's32[2]{0}', space=sflag, size = 0x8, scoped, tag = 'scoped memory for tpu_custom_call.1']
    #allocation4 [shape = 's32[2]{0}', space=sflag, size = 0x8, scoped, tag = 'scoped memory for tpu_custom_call.1']
    #allocation5 [shape = 'u8[4096]{0}', space=vmem, size = 0x1000, scoped, tag = 'input window, operand 1, single buffered']
    #allocation6 [shape = 's32[1]{0}', space=sflag, size = 0x4, scoped, tag = 'scoped memory for tpu_custom_call.1']
    #allocation7 [shape = 'u8[8192]{0}', space=vmem, size = 0x2000, scoped, tag = 'output window, operand 0']
    %7 = vsyncpa [#allocation3], 0
    %s8 = scalar_lea.sflag [#allocation3], 1
    %9 = vsyncpa %s8, 0
    %10 = vsyncpa [#allocation6], 0
    %11 = vsyncpa [#allocation4], 0
    %s12 = scalar_lea.sflag [#allocation4], 1
    %13 = vsyncpa %s12, 0
    loop: start=0, step=1, limit=4
    $region2: #{tpu_custom_call.1} parent=1 // loop_pre_header
      _
    $region3: #{tpu_custom_call.1} parent=1 // loop_header
      %s15 = sphi 0, %s19
      %p16 = scmp.ge.s32.totalorder %s15, 4
      %s25 = sphi 0, %s27
      %s28 = sphi 0, %s25
      %s29 = sphi 0, %s28
      %s45 = sphi 0, %s29
      %s49 = sphi 0, %s49
      %s51 = sphi 0, %s49
      %s52 = sphi 0, %s51
      %s66 = sphi 0, %s52
      %s72 = sphi 0, %s74
      %s75 = sphi 0, %s72
      %s76 = sphi 0, %s75
      %s92 = sphi 0, %s76
    $region4: #{tpu_custom_call.1} parent=1 // loop_header_branch
      %18 = sbr.rel (%p16) target = $region8
    $region5: #{tpu_custom_call.1} parent=1 // loop_body
      %s20 = ssub.s32 %s15, 1
      %s21 = ssub.s32 %s15, 2
      %s22 = sadd.s32 %s15, 1
      %s23 = ssub.s32 %s15, %s22
      %p24 = scmp.eq.s32.totalorder %s23, 0
      %s26 = sadd.s32 %s25, 1
      %s27 = scalar_select %p24, %s25, %s26
      %p30 = pneg %p24
      %p31 = scmp.eq.s32.totalorder %s15, 1
      %p32 = por %p30, %p31
      %p33 = scmp.ne.s32.totalorder %s25, %s28
      %p34 = scmp.eq.s32.totalorder %s15, 0
      %p35 = por %p33, %p34
      %p36 = scmp.ne.s32.totalorder %s25, %s28
      %p37 = scmp.eq.s32.totalorder %s20, 1
      %p38 = por %p36, %p37
      %p39 = scmp.ne.s32.totalorder %s28, %s29
      %p40 = scmp.eq.s32.totalorder %s20, 0
      %p41 = por %p39, %p40
      %p42 = scmp.ne.s32.totalorder %s28, %s29
      %p43 = scmp.eq.s32.totalorder %s21, 1
      %p44 = por %p42, %p43
      %p46 = scmp.ne.s32.totalorder %s29, %s45
      %p47 = scmp.eq.s32.totalorder %s21, 0
      %p48 = por %p46, %p47
      %s50 = sadd.s32 %s49, 1
      %p53 = scmp.eq.s32.totalorder %s15, 1
      %p54 = scmp.ne.s32.totalorder %s49, %s51
      %p55 = scmp.eq.s32.totalorder %s15, 0
      %p56 = por %p54, %p55
      %p57 = scmp.ne.s32.totalorder %s49, %s51
      %p58 = scmp.eq.s32.totalorder %s20, 1
      %p59 = por %p57, %p58
      %p60 = scmp.ne.s32.totalorder %s51, %s52
      %p61 = scmp.eq.s32.totalorder %s20, 0
      %p62 = por %p60, %p61
      %p63 = scmp.ne.s32.totalorder %s51, %s52
      %p64 = scmp.eq.s32.totalorder %s21, 1
      %p65 = por %p63, %p64
      %p67 = scmp.ne.s32.totalorder %s52, %s66
      %p68 = scmp.eq.s32.totalorder %s21, 0
      %p69 = por %p67, %p68
      %s70 = ssub.s32 %s15, %s22
      %p71 = scmp.eq.s32.totalorder %s70, 0
      %s73 = sadd.s32 %s72, 1
      %s74 = scalar_select %p71, %s72, %s73
      %p77 = pneg %p71
      %p78 = scmp.eq.s32.totalorder %s15, 1
      %p79 = por %p77, %p78
      %p80 = scmp.ne.s32.totalorder %s72, %s75
      %p81 = scmp.eq.s32.totalorder %s15, 0
      %p82 = por %p80, %p81
      %p83 = scmp.ne.s32.totalorder %s72, %s75
      %p84 = scmp.eq.s32.totalorder %s20, 1
      %p85 = por %p83, %p84
      %p86 = scmp.ne.s32.totalorder %s75, %s76
      %p87 = scmp.eq.s32.totalorder %s20, 0
      %p88 = por %p86, %p87
      %p89 = scmp.ne.s32.totalorder %s75, %s76
      %p90 = scmp.eq.s32.totalorder %s21, 1
      %p91 = por %p89, %p90
      %p93 = scmp.ne.s32.totalorder %s76, %s92
      %p94 = scmp.eq.s32.totalorder %s21, 0
      %p95 = por %p93, %p94
      %p96 = scmp.le.s32.totalorder 1, %s15
      %p97 = scmp.lt.s32.totalorder %s15, 3
      %p98 = pnand %p96, %p97
      %p99 = pneg %p98
      // Predicated region
      $region9: #{tpu_custom_call.1} parent=5 // pred_check
        _
      $region10: #{tpu_custom_call.1} parent=5 // pred_check_branch
        %101 = sbr.rel (%p98) target = $region12
      $region11: #{tpu_custom_call.1} parent=5 // pred_region
        %s102 = ssub.s32 %s15, 1
        // Predicated region
        $region13: #{tpu_custom_call.1} parent=11 // pred_check
          %p103 = pneg %p62
        $region14: #{tpu_custom_call.1} parent=11 // pred_check_branch
          %105 = sbr.rel (%p103) target = $region16
        $region15: #{tpu_custom_call.1} parent=11 // pred_region
          %107 = vsyncadd [#allocation6], 0
          %s109 = sshll.u32 %s1, 4
          %s110 = int_to_ptr.hbm [resolvable:$true] %s109
          %s111 = sshll.u32 [#allocation5], 4
          %s112 = int_to_ptr.vmem [resolvable:$true] %s111
          %114 = dma.hbm_to_vmem [thread:$0]  %s110, 128, %s112, [#allocation6]
        $region16: #{tpu_custom_call.1} parent=11 // pred_fallthru
          _
      $region12: #{tpu_custom_call.1} parent=5 // pred_fallthru
        _
      %p115 = scmp.lt.s32.totalorder %s15, 2
      // Predicated region
      $region17: #{tpu_custom_call.1} parent=5 // pred_check
        %p116 = pneg %p115
      $region18: #{tpu_custom_call.1} parent=5 // pred_check_branch
        %118 = sbr.rel (%p116) target = $region20
      $region19: #{tpu_custom_call.1} parent=5 // pred_region
        // Predicated region
        $region21: #{tpu_custom_call.1} parent=19 // pred_check
          %p119 = pneg %p35
        $region22: #{tpu_custom_call.1} parent=19 // pred_check_branch
          %121 = sbr.rel (%p119) target = $region24
        $region23: #{tpu_custom_call.1} parent=19 // pred_region
          %s122 = sand.u32 %s25, 1
          %s123 = scalar_lea.sflag [#allocation3], %s122
          %s124 = sand.u32 %s25, 1
          %s125 = smul.addr %s124, 8
          %s126 = scalar_lea.vmem [#allocation2], %s125
          %128 = vsyncadd %s123, 0
          %s129 = smul.addr %s15, 8
          %s130 = scalar_lea.hbm %s0, %s129
          %s132 = sshll.u32 %s130, 4
          %s133 = int_to_ptr.hbm [resolvable:$true] %s132
          %s134 = sshll.u32 %s126, 4
          %s135 = int_to_ptr.vmem [resolvable:$true] %s134
          %137 = dma.hbm_to_vmem [thread:$0]  %s133, 128, %s135, %s123
        $region24: #{tpu_custom_call.1} parent=19 // pred_fallthru
          _
      $region20: #{tpu_custom_call.1} parent=5 // pred_fallthru
        _
      %p138 = scmp.le.s32.totalorder 1, %s15
      %p139 = scmp.lt.s32.totalorder %s15, 3
      %p140 = pnand %p138, %p139
      %p141 = pneg %p140
      // Predicated region
      $region25: #{tpu_custom_call.1} parent=5 // pred_check
        _
      $region26: #{tpu_custom_call.1} parent=5 // pred_check_branch
        %143 = sbr.rel (%p140) target = $region28
      $region27: #{tpu_custom_call.1} parent=5 // pred_region
        %s144 = ssub.s32 %s15, 1
        %s145 = sand.u32 %s28, 1
        %s146 = scalar_lea.sflag [#allocation3], %s145
        %s147 = sand.u32 %s28, 1
        %s148 = smul.addr %s147, 8
        %s149 = scalar_lea.vmem [#allocation2], %s148
        // Predicated region
        $region29: #{tpu_custom_call.1} parent=27 // pred_check
          %p150 = pneg %p41
        $region30: #{tpu_custom_call.1} parent=27 // pred_check_branch
          %152 = sbr.rel (%p150) target = $region32
        $region31: #{tpu_custom_call.1} parent=27 // pred_region
          %154 = dma.done %s146, 128
        $region32: #{tpu_custom_call.1} parent=27 // pred_fallthru
          _
        // Predicated region
        $region33: #{tpu_custom_call.1} parent=27 // pred_check
          %p155 = pneg %p62
        $region34: #{tpu_custom_call.1} parent=27 // pred_check_branch
          %157 = sbr.rel (%p155) target = $region36
        $region35: #{tpu_custom_call.1} parent=27 // pred_region
          %159 = dma.done [#allocation6], 128
        $region36: #{tpu_custom_call.1} parent=27 // pred_fallthru
          _
        %s160 = sand.u32 %s28, 1
        %s161 = scalar_lea.sflag [#allocation3], %s160
        %s162 = sand.u32 %s28, 1
        %s163 = smul.addr %s162, 8
        %s164 = scalar_lea.vmem [#allocation2], %s163
        %p165 = pneg %p41
        %p166 = pneg %p38
        %p167 = pneg %p62
        %p168 = pneg %p59
        %p169 = pneg %p88
        %p170 = pneg %p85
        %s171 = sand.u32 %s75, 1
        %s172 = scalar_lea.sflag [#allocation4], %s171
        %s173 = sand.u32 %s75, 1
        %s174 = smul.addr %s173, 8
        %s175 = scalar_lea.vmem [#allocation7], %s174
        %v176 = vld [vmem:[%s149] sm:$0xff]
        %v177 = vld [vmem:[#allocation5] sm:$0xff]
        %v178 = vadd.f32 %v176, %v177
        %179 = vst [vmem:[%s175] sm:$0xff] %v178
        %s180 = sand.u32 %s75, 1
        %s181 = scalar_lea.sflag [#allocation4], %s180
        %s182 = sand.u32 %s75, 1
        %s183 = smul.addr %s182, 8
        %s184 = scalar_lea.vmem [#allocation7], %s183
        // Predicated region
        $region37: #{tpu_custom_call.1} parent=27 // pred_check
          %p185 = pneg %p85
        $region38: #{tpu_custom_call.1} parent=27 // pred_check_branch
          %187 = sbr.rel (%p185) target = $region40
        $region39: #{tpu_custom_call.1} parent=27 // pred_region
          %189 = vsyncadd %s181, 0
          %s190 = smul.addr %s20, 8
          %s191 = scalar_lea.hbm %s2, %s190
          %s193 = sshll.u32 %s184, 4
          %s194 = int_to_ptr.vmem [resolvable:$true] %s193
          %s195 = sshll.u32 %s191, 4
          %s196 = int_to_ptr.hbm [resolvable:$true] %s195
          %198 = dma.vmem_to_hbm [thread:$0]  %s194, 128, %s196, %s181
        $region40: #{tpu_custom_call.1} parent=27 // pred_fallthru
          _
      $region28: #{tpu_custom_call.1} parent=5 // pred_fallthru
        _
      %p199 = scmp.le.s32.totalorder 2, %s15
      // Predicated region
      $region41: #{tpu_custom_call.1} parent=5 // pred_check
        %p200 = pneg %p199
      $region42: #{tpu_custom_call.1} parent=5 // pred_check_branch
        %202 = sbr.rel (%p200) target = $region44
      $region43: #{tpu_custom_call.1} parent=5 // pred_region
        %s203 = ssub.s32 %s15, 2
        // Predicated region
        $region45: #{tpu_custom_call.1} parent=43 // pred_check
          %p204 = pneg %p91
        $region46: #{tpu_custom_call.1} parent=43 // pred_check_branch
          %206 = sbr.rel (%p204) target = $region48
        $region47: #{tpu_custom_call.1} parent=43 // pred_region
          %s207 = sand.u32 %s76, 1
          %s208 = scalar_lea.sflag [#allocation4], %s207
          %s209 = sand.u32 %s76, 1
          %s210 = smul.addr %s209, 8
          %s211 = scalar_lea.vmem [#allocation7], %s210
          %213 = dma.done %s208, 128
        $region48: #{tpu_custom_call.1} parent=43 // pred_fallthru
          _
      $region44: #{tpu_custom_call.1} parent=5 // pred_fallthru
        _
    $region6: #{tpu_custom_call.1} parent=1 // loop_footer
      %s19 = sadd.s32 1, %s15
    $region7: #{tpu_custom_call.1} parent=1 // loop_footer_branch
      %14 = sbr.rel target = $region3
    $region8: #{tpu_custom_call.1} parent=1 // loop_exit
      _
    %214 = vsyncpa [#allocation3], 1
    %s215 = scalar_lea.sflag [#allocation3], 1
    %216 = vsyncpa %s215, 1
    %217 = vsyncpa [#allocation6], 1
    %218 = vsyncpa [#allocation4], 1
    %s219 = scalar_lea.sflag [#allocation4], 1
    %220 = vsyncpa %s219, 1

// kernel: tpu_custom_call.1
$region0: #{tpu_custom_call.1}
  #allocation0 [shape = 'u32[]', space=smem, size = 0x4, offset = 0x4, fixed_abs, tag = 'smem constant byte address 0x4 - core index']
  #allocation1 [shape = 'u32[72,128]{1,0:T(1,128)}', space=vmem, size = 0x9000, scoped, tag = 'internal scratch']
  %s0 = inlined_call_operand.hbm [shape: f32[8,128], index: 0, kind: input, shape index: {}]
  %s1 = inlined_call_operand.hbm [shape: f32[128,128], index: 1, kind: input, shape index: {}]
  %s2 = inlined_call_operand.vmem [shape: f32[1,128], index: 2, kind: input, shape index: {}]
  %s3 = inlined_call_operand.hbm [shape: f32[128,128], index: 3, kind: input, shape index: {}]
  %s4 = inlined_call_operand.vmem [shape: f32[1,128], index: 4, kind: input, shape index: {}]
  %s5 = inlined_call_operand.hbm [shape: f32[128,128], index: 5, kind: input, shape index: {}]
  %s6 = inlined_call_operand.vmem [shape: f32[1,128], index: 6, kind: input, shape index: {}]
  %s7 = inlined_call_operand.hbm [shape: f32[128,128], index: 7, kind: input, shape index: {}]
  %s8 = inlined_call_operand.vmem [shape: f32[1,128], index: 8, kind: input, shape index: {}]
  %s9 = inlined_call_operand.hbm [shape: f32[8,128], index: 9, kind: output, shape index: {}]
  %s10 = sld [smem:[#allocation0]]
  $region66: #{tpu_custom_call.1} parent=0
    _
  %s12 = ssub.s32 1, %s10
  %s13 = scalar_select 0, %s12, %s10
  $region1: #{tpu_custom_call.1} parent=0
    #allocation2 [shape = 'u8[4096]{0}', space=vmem, size = 0x1000, scoped, tag = 'input window, operand 0, single buffered']
    #allocation3 [shape = 's32[1]{0}', space=sflag, size = 0x4, scoped, tag = 'scoped memory for tpu_custom_call.1']
    #allocation4 [shape = 's32[1]{0}', space=sflag, size = 0x4, scoped, tag = 'scoped memory for tpu_custom_call.1']
    #allocation5 [shape = 'u8[65536]{0}', space=vmem, size = 0x10000, scoped, tag = 'input window, operand 1, single buffered']
    #allocation6 [shape = 's32[1]{0}', space=sflag, size = 0x4, scoped, tag = 'scoped memory for tpu_custom_call.1']
    #allocation7 [shape = 'u8[65536]{0}', space=vmem, size = 0x10000, scoped, tag = 'input window, operand 3, single buffered']
    #allocation8 [shape = 'u8[65536]{0}', space=vmem, size = 0x10000, scoped, tag = 'input window, operand 5, single buffered']
    #allocation9 [shape = 's32[1]{0}', space=sflag, size = 0x4, scoped, tag = 'scoped memory for tpu_custom_call.1']
    #allocation10 [shape = 'u8[65536]{0}', space=vmem, size = 0x10000, scoped, tag = 'input window, operand 7, single buffered']
    #allocation11 [shape = 'u8[4096]{0}', space=vmem, size = 0x1000, scoped, tag = 'output window, operand 0, single buffered']
    %14 = vsyncpa [#allocation3], 0
    %15 = vsyncpa [#allocation6], 0
    %16 = vsyncpa [#allocation9], 0
    %17 = vsyncpa [#allocation4], 0
    // Predicated region
    $region2: #{tpu_custom_call.1} parent=1 // pred_check
      _
    $region3: #{tpu_custom_call.1} parent=1 // pred_check_branch
      %19 = sbr.rel (0) target = $region5
    $region4: #{tpu_custom_call.1} parent=1 // pred_region
      %21 = vsyncadd [#allocation3], 0
      %s23 = sshll.u32 %s0, 4
      %s24 = int_to_ptr.hbm [resolvable:$true] %s23
      %s25 = sshll.u32 [#allocation2], 4
      %s26 = int_to_ptr.vmem [resolvable:$true] %s25
      %28 = dma.hbm_to_vmem [thread:$0]  %s24, 128, %s26, [#allocation3]
    $region5: #{tpu_custom_call.1} parent=1 // pred_fallthru
      _
    // Predicated region
    $region6: #{tpu_custom_call.1} parent=1 // pred_check
      _
    $region7: #{tpu_custom_call.1} parent=1 // pred_check_branch
      %30 = sbr.rel (0) target = $region9
    $region8: #{tpu_custom_call.1} parent=1 // pred_region
      %32 = vsyncadd [#allocation6], 0
      %s33 = sshll.u32 %s1, 4
      %s34 = int_to_ptr.hbm [resolvable:$true] %s33
      %s35 = sshll.u32 [#allocation5], 4
      %s36 = int_to_ptr.vmem [resolvable:$true] %s35
      %41 = dma.hbm_to_vmem [thread:$0]  %s34, 2048, %s36, [#allocation6], 128, 128, 8
    $region9: #{tpu_custom_call.1} parent=1 // pred_fallthru
      _
    // Predicated region
    $region10: #{tpu_custom_call.1} parent=1 // pred_check
      _
    $region11: #{tpu_custom_call.1} parent=1 // pred_check_branch
      %43 = sbr.rel (0) target = $region13
    $region12: #{tpu_custom_call.1} parent=1 // pred_region
      _
    $region13: #{tpu_custom_call.1} parent=1 // pred_fallthru
      _
    // Predicated region
    $region14: #{tpu_custom_call.1} parent=1 // pred_check
      _
    $region15: #{tpu_custom_call.1} parent=1 // pred_check_branch
      %45 = sbr.rel (0) target = $region17
    $region16: #{tpu_custom_call.1} parent=1 // pred_region
      %47 = vsyncadd [#allocation6], 0
      %s48 = sshll.u32 %s3, 4
      %s49 = int_to_ptr.hbm [resolvable:$true] %s48
      %s50 = sshll.u32 [#allocation7], 4
      %s51 = int_to_ptr.vmem [resolvable:$true] %s50
      %56 = dma.hbm_to_vmem [thread:$0]  %s49, 2048, %s51, [#allocation6], 128, 128, 8
    $region17: #{tpu_custom_call.1} parent=1 // pred_fallthru
      _
    // Predicated region
    $region18: #{tpu_custom_call.1} parent=1 // pred_check
      _
    $region19: #{tpu_custom_call.1} parent=1 // pred_check_branch
      %58 = sbr.rel (0) target = $region21
    $region20: #{tpu_custom_call.1} parent=1 // pred_region
      _
    $region21: #{tpu_custom_call.1} parent=1 // pred_fallthru
      _
    // Predicated region
    $region22: #{tpu_custom_call.1} parent=1 // pred_check
      _
    $region23: #{tpu_custom_call.1} parent=1 // pred_check_branch
      %60 = sbr.rel (0) target = $region25
    $region24: #{tpu_custom_call.1} parent=1 // pred_region
      %62 = vsyncadd [#allocation9], 0
      %s63 = sshll.u32 %s5, 4
      %s64 = int_to_ptr.hbm [resolvable:$true] %s63
      %s65 = sshll.u32 [#allocation8], 4
      %s66 = int_to_ptr.vmem [resolvable:$true] %s65
      %71 = dma.hbm_to_vmem [thread:$0]  %s64, 2048, %s66, [#allocation9], 128, 128, 8
    $region25: #{tpu_custom_call.1} parent=1 // pred_fallthru
      _
    // Predicated region
    $region26: #{tpu_custom_call.1} parent=1 // pred_check
      _
    $region27: #{tpu_custom_call.1} parent=1 // pred_check_branch
      %73 = sbr.rel (0) target = $region29
    $region28: #{tpu_custom_call.1} parent=1 // pred_region
      _
    $region29: #{tpu_custom_call.1} parent=1 // pred_fallthru
      _
    // Predicated region
    $region30: #{tpu_custom_call.1} parent=1 // pred_check
      _
    $region31: #{tpu_custom_call.1} parent=1 // pred_check_branch
      %75 = sbr.rel (0) target = $region33
    $region32: #{tpu_custom_call.1} parent=1 // pred_region
      %77 = vsyncadd [#allocation9], 0
      %s78 = sshll.u32 %s7, 4
      %s79 = int_to_ptr.hbm [resolvable:$true] %s78
      %s80 = sshll.u32 [#allocation10], 4
      %s81 = int_to_ptr.vmem [resolvable:$true] %s80
      %86 = dma.hbm_to_vmem [thread:$0]  %s79, 2048, %s81, [#allocation9], 128, 128, 8
    $region33: #{tpu_custom_call.1} parent=1 // pred_fallthru
      _
    // Predicated region
    $region34: #{tpu_custom_call.1} parent=1 // pred_check
      _
    $region35: #{tpu_custom_call.1} parent=1 // pred_check_branch
      %88 = sbr.rel (0) target = $region37
    $region36: #{tpu_custom_call.1} parent=1 // pred_region
      _
    $region37: #{tpu_custom_call.1} parent=1 // pred_fallthru
      _
    // Predicated region
    $region38: #{tpu_custom_call.1} parent=1 // pred_check
      _
    $region39: #{tpu_custom_call.1} parent=1 // pred_check_branch
      %90 = sbr.rel (0) target = $region41
    $region40: #{tpu_custom_call.1} parent=1 // pred_region
      %92 = dma.done [#allocation3], 128
    $region41: #{tpu_custom_call.1} parent=1 // pred_fallthru
      _
    // Predicated region
    $region42: #{tpu_custom_call.1} parent=1 // pred_check
      _
    $region43: #{tpu_custom_call.1} parent=1 // pred_check_branch
      %94 = sbr.rel (0) target = $region45
    $region44: #{tpu_custom_call.1} parent=1 // pred_region
      %96 = dma.done [#allocation6], 2048
    $region45: #{tpu_custom_call.1} parent=1 // pred_fallthru
      _
    // Predicated region
    $region46: #{tpu_custom_call.1} parent=1 // pred_check
      _
    $region47: #{tpu_custom_call.1} parent=1 // pred_check_branch
      %98 = sbr.rel (0) target = $region49
    $region48: #{tpu_custom_call.1} parent=1 // pred_region
      %100 = dma.done [#allocation6], 2048
    $region49: #{tpu_custom_call.1} parent=1 // pred_fallthru
      _
    // Predicated region
    $region50: #{tpu_custom_call.1} parent=1 // pred_check
      _
    $region51: #{tpu_custom_call.1} parent=1 // pred_check_branch
      %102 = sbr.rel (0) target = $region53
    $region52: #{tpu_custom_call.1} parent=1 // pred_region
      %104 = dma.done [#allocation9], 2048
    $region53: #{tpu_custom_call.1} parent=1 // pred_fallthru
      _
    // Predicated region
    $region54: #{tpu_custom_call.1} parent=1 // pred_check
      _
    $region55: #{tpu_custom_call.1} parent=1 // pred_check_branch
      %106 = sbr.rel (0) target = $region57
    $region56: #{tpu_custom_call.1} parent=1 // pred_region
      %108 = dma.done [#allocation9], 2048
    $region57: #{tpu_custom_call.1} parent=1 // pred_fallthru
      _
    %v109 = vld [vmem:[#allocation2] sm:$0xff]
    %v110 = vld [vmem:[#allocation5] sm:$0xff]
    %v111 = vld [vmem:[#allocation5 + $0x8] sm:$0xff]
    %v112 = vld [vmem:[#allocation5 + $0x10] sm:$0xff]
    %v113 = vld [vmem:[#allocation5 + $0x18] sm:$0xff]
    %v114 = vld [vmem:[#allocation5 + $0x20] sm:$0xff]
    %v115 = vld [vmem:[#allocation5 + $0x28] sm:$0xff]
    %v116 = vld [vmem:[#allocation5 + $0x30] sm:$0xff]
    %v117 = vld [vmem:[#allocation5 + $0x38] sm:$0xff]
    %v118 = vld [vmem:[#allocation5 + $0x40] sm:$0xff]
    %v119 = vld [vmem:[#allocation5 + $0x48] sm:$0xff]
    %v120 = vld [vmem:[#allocation5 + $0x50] sm:$0xff]
    %v121 = vld [vmem:[#allocation5 + $0x58] sm:$0xff]
    %v122 = vld [vmem:[#allocation5 + $0x60] sm:$0xff]
    %v123 = vld [vmem:[#allocation5 + $0x68] sm:$0xff]
    %v124 = vld [vmem:[#allocation5 + $0x70] sm:$0xff]
    %v125 = vld [vmem:[#allocation5 + $0x78] sm:$0xff]
    %v126 = vld [vmem:[%s2] sm:$0x1]
    %v128 = vperm.slane %v126, 0
    %130 = vmatpush.msra.mxu0 %v125
    %131 = vmatpush.msra.mxu0 %v124
    %132 = vmatpush.msra.mxu0 %v123
    %133 = vmatpush.msra.mxu0 %v122
    %134 = vmatpush.msra.mxu0 %v121
    %135 = vmatpush.msra.mxu0 %v120
    %136 = vmatpush.msra.mxu0 %v119
    %137 = vmatpush.msra.mxu0 %v118
    %138 = vmatpush.msra.mxu0 %v117
    %139 = vmatpush.msra.mxu0 %v116
    %140 = vmatpush.msra.mxu0 %v115
    %141 = vmatpush.msra.mxu0 %v114
    %142 = vmatpush.msra.mxu0 %v113
    %143 = vmatpush.msra.mxu0 %v112
    %144 = vmatpush.msra.mxu0 %v111
    %145 = vmatpush.msra.mxu0 %v110
    %146 = vmatmul.f32.gmra.mxu0 %v109
    %v147 = vpop.f32.mrf.mxu0
    %v148 = vadd.f32 %v128, %v147
    %149 = vdwg.mxu0
    %v150 = vmax.f32 %v148, 0.0
    %v151 = vld [vmem:[#allocation7] sm:$0xff]
    %v152 = vld [vmem:[#allocation7 + $0x8] sm:$0xff]
    %v153 = vld [vmem:[#allocation7 + $0x10] sm:$0xff]
    %v154 = vld [vmem:[#allocation7 + $0x18] sm:$0xff]
    %v155 = vld [vmem:[#allocation7 + $0x20] sm:$0xff]
    %v156 = vld [vmem:[#allocation7 + $0x28] sm:$0xff]
    %v157 = vld [vmem:[#allocation7 + $0x30] sm:$0xff]
    %v158 = vld [vmem:[#allocation7 + $0x38] sm:$0xff]
    %v159 = vld [vmem:[#allocation7 + $0x40] sm:$0xff]
    %v160 = vld [vmem:[#allocation7 + $0x48] sm:$0xff]
    %v161 = vld [vmem:[#allocation7 + $0x50] sm:$0xff]
    %v162 = vld [vmem:[#allocation7 + $0x58] sm:$0xff]
    %v163 = vld [vmem:[#allocation7 + $0x60] sm:$0xff]
    %v164 = vld [vmem:[#allocation7 + $0x68] sm:$0xff]
    %v165 = vld [vmem:[#allocation7 + $0x70] sm:$0xff]
    %v166 = vld [vmem:[#allocation7 + $0x78] sm:$0xff]
    %v167 = vld [vmem:[%s4] sm:$0x1]
    %v169 = vperm.slane %v167, 0
    %171 = vmatpush.msra.mxu0 %v166
    %172 = vmatpush.msra.mxu0 %v165
    %173 = vmatpush.msra.mxu0 %v164
    %174 = vmatpush.msra.mxu0 %v163
    %175 = vmatpush.msra.mxu0 %v162
    %176 = vmatpush.msra.mxu0 %v161
    %177 = vmatpush.msra.mxu0 %v160
    %178 = vmatpush.msra.mxu0 %v159
    %179 = vmatpush.msra.mxu0 %v158
    %180 = vmatpush.msra.mxu0 %v157
    %181 = vmatpush.msra.mxu0 %v156
    %182 = vmatpush.msra.mxu0 %v155
    %183 = vmatpush.msra.mxu0 %v154
    %184 = vmatpush.msra.mxu0 %v153
    %185 = vmatpush.msra.mxu0 %v152
    %186 = vmatpush.msra.mxu0 %v151
    %187 = vmatmul.f32.gmra.mxu0 %v150
    %v188 = vpop.f32.mrf.mxu0
    %v189 = vadd.f32 %v169, %v188
    %190 = vdwg.mxu0
    %v191 = vmax.f32 %v189, 0.0
    %v192 = vld [vmem:[#allocation8] sm:$0xff]
    %v193 = vld [vmem:[#allocation8 + $0x8] sm:$0xff]
    %v194 = vld [vmem:[#allocation8 + $0x10] sm:$0xff]
    %v195 = vld [vmem:[#allocation8 + $0x18] sm:$0xff]
    %v196 = vld [vmem:[#allocation8 + $0x20] sm:$0xff]
    %v197 = vld [vmem:[#allocation8 + $0x28] sm:$0xff]
    %v198 = vld [vmem:[#allocation8 + $0x30] sm:$0xff]
    %v199 = vld [vmem:[#allocation8 + $0x38] sm:$0xff]
    %v200 = vld [vmem:[#allocation8 + $0x40] sm:$0xff]
    %v201 = vld [vmem:[#allocation8 + $0x48] sm:$0xff]
    %v202 = vld [vmem:[#allocation8 + $0x50] sm:$0xff]
    %v203 = vld [vmem:[#allocation8 + $0x58] sm:$0xff]
    %v204 = vld [vmem:[#allocation8 + $0x60] sm:$0xff]
    %v205 = vld [vmem:[#allocation8 + $0x68] sm:$0xff]
    %v206 = vld [vmem:[#allocation8 + $0x70] sm:$0xff]
    %v207 = vld [vmem:[#allocation8 + $0x78] sm:$0xff]
    %v208 = vld [vmem:[%s6] sm:$0x1]
    %v210 = vperm.slane %v208, 0
    %212 = vmatpush.msra.mxu0 %v207
    %213 = vmatpush.msra.mxu0 %v206
    %214 = vmatpush.msra.mxu0 %v205
    %215 = vmatpush.msra.mxu0 %v204
    %216 = vmatpush.msra.mxu0 %v203
    %217 = vmatpush.msra.mxu0 %v202
    %218 = vmatpush.msra.mxu0 %v201
    %219 = vmatpush.msra.mxu0 %v200
    %220 = vmatpush.msra.mxu0 %v199
    %221 = vmatpush.msra.mxu0 %v198
    %222 = vmatpush.msra.mxu0 %v197
    %223 = vmatpush.msra.mxu0 %v196
    %224 = vmatpush.msra.mxu0 %v195
    %225 = vmatpush.msra.mxu0 %v194
    %226 = vmatpush.msra.mxu0 %v193
    %227 = vmatpush.msra.mxu0 %v192
    %228 = vmatmul.f32.gmra.mxu0 %v191
    %v229 = vpop.f32.mrf.mxu0
    %v230 = vadd.f32 %v210, %v229
    %231 = vdwg.mxu0
    %v232 = vmax.f32 %v230, 0.0
    %v233 = vld [vmem:[#allocation10] sm:$0xff]
    %v234 = vld [vmem:[#allocation10 + $0x8] sm:$0xff]
    %v235 = vld [vmem:[#allocation10 + $0x10] sm:$0xff]
    %v236 = vld [vmem:[#allocation10 + $0x18] sm:$0xff]
    %v237 = vld [vmem:[#allocation10 + $0x20] sm:$0xff]
    %v238 = vld [vmem:[#allocation10 + $0x28] sm:$0xff]
    %v239 = vld [vmem:[#allocation10 + $0x30] sm:$0xff]
    %v240 = vld [vmem:[#allocation10 + $0x38] sm:$0xff]
    %v241 = vld [vmem:[#allocation10 + $0x40] sm:$0xff]
    %v242 = vld [vmem:[#allocation10 + $0x48] sm:$0xff]
    %v243 = vld [vmem:[#allocation10 + $0x50] sm:$0xff]
    %v244 = vld [vmem:[#allocation10 + $0x58] sm:$0xff]
    %v245 = vld [vmem:[#allocation10 + $0x60] sm:$0xff]
    %v246 = vld [vmem:[#allocation10 + $0x68] sm:$0xff]
    %v247 = vld [vmem:[#allocation10 + $0x70] sm:$0xff]
    %v248 = vld [vmem:[#allocation10 + $0x78] sm:$0xff]
    %v249 = vld [vmem:[%s8] sm:$0x1]
    %v251 = vperm.slane %v249, 0
    %253 = vmatpush.msra.mxu0 %v248
    %254 = vmatpush.msra.mxu0 %v247
    %255 = vmatpush.msra.mxu0 %v246
    %256 = vmatpush.msra.mxu0 %v245
    %257 = vmatpush.msra.mxu0 %v244
    %258 = vmatpush.msra.mxu0 %v243
    %259 = vmatpush.msra.mxu0 %v242
    %260 = vmatpush.msra.mxu0 %v241
    %261 = vmatpush.msra.mxu0 %v240
    %262 = vmatpush.msra.mxu0 %v239
    %263 = vmatpush.msra.mxu0 %v238
    %264 = vmatpush.msra.mxu0 %v237
    %265 = vmatpush.msra.mxu0 %v236
    %266 = vmatpush.msra.mxu0 %v235
    %267 = vmatpush.msra.mxu0 %v234
    %268 = vmatpush.msra.mxu0 %v233
    %269 = vmatmul.f32.gmra.mxu0 %v232
    %v270 = vpop.f32.mrf.mxu0
    %v271 = vadd.f32 %v251, %v270
    %272 = vdwg.mxu0
    %273 = vst [vmem:[#allocation11] sm:$0xff] %v271
    // Predicated region
    $region58: #{tpu_custom_call.1} parent=1 // pred_check
      _
    $region59: #{tpu_custom_call.1} parent=1 // pred_check_branch
      %275 = sbr.rel (0) target = $region61
    $region60: #{tpu_custom_call.1} parent=1 // pred_region
      %277 = vsyncadd [#allocation4], 0
      %s279 = sshll.u32 [#allocation11], 4
      %s280 = int_to_ptr.vmem [resolvable:$true] %s279
      %s281 = sshll.u32 %s9, 4
      %s282 = int_to_ptr.hbm [resolvable:$true] %s281
      %284 = dma.vmem_to_hbm [thread:$0]  %s280, 128, %s282, [#allocation4]
    $region61: #{tpu_custom_call.1} parent=1 // pred_fallthru
      _
    // Predicated region
    $region62: #{tpu_custom_call.1} parent=1 // pred_check
      _
    $region63: #{tpu_custom_call.1} parent=1 // pred_check_branch
      %286 = sbr.rel (0) target = $region65
    $region64: #{tpu_custom_call.1} parent=1 // pred_region
      %288 = dma.done [#allocation4], 128
    $region65: #{tpu_custom_call.1} parent=1 // pred_fallthru
      _
    %289 = vsyncpa [#allocation3], 1
    %290 = vsyncpa [#allocation6], 1
    %291 = vsyncpa [#allocation9], 1
    %292 = vsyncpa [#allocation4], 1

</llo_original>
